<compile_context>
chip_gen: v7x
topology: tpu7x:2x2x1
jax: 0.10.0
libtpu: 0.0.40
codegen_flags: <defaults>
</compile_context>

<pallas_src>
import functools

import jax
import jax.numpy as jnp
from jax.experimental import pallas as pl
from jax.experimental.pallas import tpu as pltpu


def _round_up(n, m):
    return ((n + m - 1) // m) * m


# -----------------------------------------------------------------------------
# Kernel
# -----------------------------------------------------------------------------
def vsn_kernel(x_ref, w1_ref, b1_ref, wg1_ref, bg1_ref, wg2_ref, bg2_ref,
               exp_ref, w2b2_ref, out_ref):
    cdt = w1_ref.dtype                       # compute dtype (bf16 or f32)
    x = x_ref[...]                           # (TB, F*D), compute dtype

    # ---- Stage 1a: per-feature Linear1 (block-diagonal), lane-aligned N=FH.
    h = jnp.dot(x, w1_ref[...], preferred_element_type=jnp.float32)
    h = jnp.maximum(h + b1_ref[...], 0.0)    # (TB, F*H), f32, ReLU

    # ---- Stage 1b: gate Linear1 (separate dot, same LHS -> no slicing of a
    #      non-lane-aligned N=FH+H result).
    gh = jnp.dot(x, wg1_ref[...], preferred_element_type=jnp.float32)
    gh = jnp.maximum(gh + bg1_ref[...], 0.0)  # (TB, H), f32, ReLU

    # ---- Gate Linear2 + softmax over features (f32 math, exact reciprocal).
    logits = (jnp.dot(gh.astype(cdt), wg2_ref[...],
                      preferred_element_type=jnp.float32)
              + bg2_ref[...])                # (TB, F)
    m = jnp.max(logits, axis=-1, keepdims=True)
    e = jnp.exp(logits - m)
    inv = pl.reciprocal(jnp.sum(e, axis=-1, keepdims=True))   # exact (EUP slack)
    w = e * inv                              # (TB, F) softmax weights, f32

    # ---- Broadcast w over each feature's H hidden lanes via a tiny matmul
    #      (avoids F per-feature XLU lane-broadcasts).
    ws = jnp.dot(w.astype(cdt), exp_ref[...],
                 preferred_element_type=jnp.float32)           # (TB, F*H)

    # ---- Stage 2 (fused bias): [h*ws, w] @ [W2_stacked ; b2]
    #      == sum_i w_i * (ReLU(x_i@W1_i+b1_i) @ W2_i + b2_i).
    lhs = jnp.concatenate([h * ws, w], axis=1).astype(cdt)     # (TB, F*H + F)
    out = jnp.dot(lhs, w2b2_ref[...],
                  preferred_element_type=jnp.float32)          # (TB, D)

    # ---- Single lane-packed output slab: [:, :D] = weighted output,
    #      [:, D:] = softmax weights (one output stream per grid step).
    out_ref[...] = jnp.concatenate([out, w], axis=1).astype(out_ref.dtype)


# -----------------------------------------------------------------------------
# One-time host-side weight fusion (hoisted out of the per-call path).
# -----------------------------------------------------------------------------
def prepare_vsn_params(params, compute_dtype=jnp.bfloat16):
    """Fuse per-feature / gate weights once per parameter set."""
    w1, b1, w2, b2, wg1, bg1, wg2, bg2 = params
    F, D, H = w1.shape
    FD, FH = F * D, F * H

    # Block-diagonal per-feature Linear1: one (TB,FD)@(FD,FH) dot replaces F
    # tiny K=D matmuls.  (For F > ~16 prefer a per-feature loop instead.)
    eye = jnp.eye(F, dtype=jnp.float32)
    w1_bd = jnp.einsum('fdh,fg->fdgh', w1.astype(jnp.float32), eye)
    w1_bd = w1_bd.reshape(FD, FH)                                   # (FD, FH)

    # Expansion matrix: row i has ones on lanes [i*H, (i+1)*H).
    expand = jnp.repeat(eye, H, axis=1)                             # (F, FH)

    # Stage-2 fused weight: stacked Linear2 weights with the biases appended,
    # so the weighted bias term rides the same MXU dot.
    w2b2 = jnp.concatenate([w2.reshape(FH, D), b2], axis=0)         # (FH+F, D)

    cdt = compute_dtype
    return dict(
        w1_bd=w1_bd.astype(cdt),                       # (FD, FH)
        b1=b1.reshape(1, FH).astype(jnp.float32),      # (1, FH)   f32 bias
        wg1=wg1.reshape(FD, H).astype(cdt),            # (FD, H)
        bg1=bg1.reshape(1, H).astype(jnp.float32),     # (1, H)    f32 bias
        wg2=wg2.astype(cdt),                           # (H, F)
        bg2=bg2.reshape(1, F).astype(jnp.float32),     # (1, F)    f32 bias
        expand=expand.astype(cdt),                     # (F, FH)
        w2b2=w2b2.astype(cdt),                         # (FH+F, D)
    )


# -----------------------------------------------------------------------------
# Forward wrapper
# -----------------------------------------------------------------------------
@functools.partial(jax.jit, static_argnames=("tb",))
def variable_selection_network(x, fused, tb=None):
    """x: (B, F, D) float32, fused: output of prepare_vsn_params.

    Returns (weighted_output (B, D), weights (B, F)).
    """
    B = x.shape[0]
    F, FH = fused["expand"].shape
    FD = fused["w1_bd"].shape[0]
    D = FD // F
    H = FH // F
    cdt = fused["w1_bd"].dtype
    itemsize = cdt.itemsize

    # ---- Batch tile (sweepable; large default to amortize the ~0.35 us
    #      per-grid-step overhead).  TC-aware clamp: never exceed ceil(B/2)
    #      so the "parallel" grid axis has >= 2 steps on v7x (2 TCs).
    desired = 2048 if tb is None else tb
    TB = max(8, min(_round_up(desired, 8), _round_up(pl.cdiv(B, 2), 8)))
    B_pad = _round_up(B, TB)
    grid = (B_pad // TB,)

    # Stream x in the compute dtype (halves the dominant HBM stream for bf16).
    x_flat = x.reshape(B, FD).astype(cdt)
    if B_pad != B:
        # Padded rows produce finite garbage and are sliced off below; they
        # must never be consumed.
        x_flat = jnp.pad(x_flat, ((0, B_pad - B), (0, 0)))

    # ---- VMEM budget: generation-aware cap (75% of physical VMEM), with a
    #      v7x-safe fallback.  Weights are grid-invariant but Pallas may
    #      double-buffer every input, so count them twice.
    try:
        vmem_phys = int(pltpu.get_tpu_info().vmem_capacity_bytes)
    except Exception:
        vmem_phys = 64 * 1024 * 1024
    vmem_cap = int(0.75 * vmem_phys)
    weight_bytes = int(sum(int(a.size) * a.dtype.itemsize for a in fused.values()))
    tile_in_bytes = TB * FD * itemsize
    tile_out_bytes = TB * (D + F) * 4
    inter_bytes = 4 * TB * (3 * FH + H + 3 * F)        # f32 intermediates
    vmem_need = (2 * (tile_in_bytes + tile_out_bytes) + 2 * weight_bytes
                 + inter_bytes + (4 << 20))
    vmem_limit = int(min(vmem_cap, max(32 * 1024 * 1024, vmem_need)))

    # ---- Cost estimate (advisory for the XLA scheduler).
    flops_per_row = (2 * FD * FH          # stage-1 block-diagonal dot
                     + 2 * FD * H         # gate Linear1
                     + 2 * H * F          # gate Linear2
                     + 2 * F * FH         # weight expansion
                     + 2 * (FH + F) * D   # fused stage-2 dot (incl. bias)
                     + 2 * FH)            # elementwise scale / ReLU
    cost = pl.CostEstimate(
        flops=int(B_pad * flops_per_row),
        transcendentals=int(B_pad * F),   # exp in softmax
        bytes_accessed=int(B_pad * (FD * itemsize + (D + F) * 4) + weight_bytes),
    )

    grid_spec = pltpu.PrefetchScalarGridSpec(
        num_scalar_prefetch=0,
        grid=grid,
        in_specs=[
            pl.BlockSpec((TB, FD), lambda b: (b, 0)),        # x (streamed)
            # Grid-invariant weights: constant index maps -> VMEM-resident.
            # (For very large F, single-buffer these via
            #  pipeline_mode=pl.Buffered(1) to save VMEM on v7x.)
            pl.BlockSpec((FD, FH), lambda b: (0, 0)),        # block-diag W1
            pl.BlockSpec((1, FH), lambda b: (0, 0)),         # stacked b1 (f32)
            pl.BlockSpec((FD, H), lambda b: (0, 0)),         # gate W1
            pl.BlockSpec((1, H), lambda b: (0, 0)),          # gate b1 (f32)
            pl.BlockSpec((H, F), lambda b: (0, 0)),          # gate W2
            pl.BlockSpec((1, F), lambda b: (0, 0)),          # gate b2 (f32)
            pl.BlockSpec((F, FH), lambda b: (0, 0)),         # weight expansion
            pl.BlockSpec((FH + F, D), lambda b: (0, 0)),     # fused [W2; b2]
        ],
        out_specs=pl.BlockSpec((TB, D + F), lambda b: (b, 0)),   # packed slab
    )

    out_slab = pl.pallas_call(
        vsn_kernel,
        out_shape=jax.ShapeDtypeStruct((B_pad, D + F), jnp.float32),
        grid_spec=grid_spec,
        compiler_params=pltpu.CompilerParams(
            dimension_semantics=("parallel",),
            vmem_limit_bytes=vmem_limit),
        cost_estimate=cost,
    )(x_flat, fused["w1_bd"], fused["b1"], fused["wg1"], fused["bg1"],
      fused["wg2"], fused["bg2"], fused["expand"], fused["w2b2"])

    out_slab = out_slab[:B]
    return out_slab[:, :D], out_slab[:, D:]


# -----------------------------------------------------------------------------
# Synthetic parameters + pure-JAX reference (PyTorch eval-mode semantics)
# -----------------------------------------------------------------------------
def make_params(key, input_dim, num_features, hidden_dim):
    ks = jax.random.split(key, 8)
    D, F, H = input_dim, num_features, hidden_dim
    s = 0.1
    w1 = s * jax.random.normal(ks[0], (F, D, H), jnp.float32)   # Linear1_i: D -> H
    b1 = s * jax.random.normal(ks[1], (F, H), jnp.float32)
    w2 = s * jax.random.normal(ks[2], (F, H, D), jnp.float32)   # Linear2_i: H -> D
    b2 = s * jax.random.normal(ks[3], (F, D), jnp.float32)
    wg1 = s * jax.random.normal(ks[4], (F, D, H), jnp.float32)  # gate Linear1: F*D -> H
    bg1 = s * jax.random.normal(ks[5], (1, H), jnp.float32)
    wg2 = s * jax.random.normal(ks[6], (H, F), jnp.float32)     # gate Linear2: H -> F
    bg2 = s * jax.random.normal(ks[7], (1, F), jnp.float32)
    return (w1, b1, w2, b2, wg1, bg1, wg2, bg2)


def reference(x, params):
    w1, b1, w2, b2, wg1, bg1, wg2, bg2 = params
    B, F, D = x.shape
    outs = []
    for i in range(F):
        h = jnp.maximum(x[:, i, :] @ w1[i] + b1[i], 0.0)
        outs.append((h @ w2[i] + b2[i])[:, None, :])
    var_outputs = jnp.concatenate(outs, axis=1)                  # (B, F, D)
    flat = x.reshape(B, F * D)
    g = jnp.maximum(flat @ wg1.reshape(F * D, -1) + bg1[0], 0.0)
    weights = jax.nn.softmax(g @ wg2 + bg2[0], axis=-1)          # (B, F)
    weighted = jnp.sum(var_outputs * weights[:, :, None], axis=1)
    return weighted, weights


if __name__ == "__main__":
    # Small shapes consistent with the module:
    # batch=2, num_features=4, input_dim=16, hidden_dim=32.
    B, F, D, H = 2, 4, 16, 32
    key = jax.random.PRNGKey(0)
    kx, kp = jax.random.split(key)
    x = jax.random.normal(kx, (B, F, D), jnp.float32)
    params = make_params(kp, D, F, H)

    ref_out, ref_w = reference(x, params)

    # Default (performance) path: bf16 activation stream + bf16 weights,
    # f32 accumulation / softmax.  Tolerance reflects bf16 rounding of the
    # inputs to each MXU dot (accumulation stays f32).
    fused_bf16 = prepare_vsn_params(params, compute_dtype=jnp.bfloat16)
    out, weights = variable_selection_network(x, fused_bf16)
    out, weights = jax.block_until_ready((out, weights))
    assert out.shape == (B, D) and weights.shape == (B, F)
    assert jnp.allclose(out, ref_out, atol=2e-2, rtol=2e-2)
    assert jnp.allclose(weights, ref_w, atol=2e-2, rtol=2e-2)

    # f32 path: same kernel, tight agreement (exact reciprocal in softmax).
    fused_f32 = prepare_vsn_params(params, compute_dtype=jnp.float32)
    out32, w32 = variable_selection_network(x, fused_f32)
    out32, w32 = jax.block_until_ready((out32, w32))
    assert jnp.allclose(out32, ref_out, atol=2e-3, rtol=2e-3)
    assert jnp.allclose(w32, ref_w, atol=2e-3, rtol=2e-3)

    print("KERNEL_OK")
</pallas_src>

<mosaic_0001>
module attributes {stable_mosaic.version = 11 : i64} {
  func.func @vsn_kernel(%arg0: i32, %arg1: memref<8x64xbf16, #tpu.memory_space<vmem>>, %arg2: memref<64x128xbf16, #tpu.memory_space<vmem>>, %arg3: memref<1x128xf32, #tpu.memory_space<vmem>>, %arg4: memref<64x32xbf16, #tpu.memory_space<vmem>>, %arg5: memref<1x32xf32, #tpu.memory_space<vmem>>, %arg6: memref<32x4xbf16, #tpu.memory_space<vmem>>, %arg7: memref<1x4xf32, #tpu.memory_space<vmem>>, %arg8: memref<4x128xbf16, #tpu.memory_space<vmem>>, %arg9: memref<132x16xbf16, #tpu.memory_space<vmem>>, %arg10: memref<8x20xf32, #tpu.memory_space<vmem>>) attributes {dimension_semantics = [#tpu.dimension_semantics<parallel>], iteration_bounds = array<i64: 1>, scalar_prefetch = 0 : i64, scratch_operands = 0 : i64, tpu.core_type = #tpu.core_type<tc>, window_params = [{transform_indices = @transform_0, window_bounds = array<i64: 8, 64>}, {pipeline_mode = #tpu.pipeline_mode<synchronous>, transform_indices = @transform_1, window_bounds = array<i64: 64, 128>}, {pipeline_mode = #tpu.pipeline_mode<synchronous>, transform_indices = @transform_2, window_bounds = array<i64: 1, 128>}, {pipeline_mode = #tpu.pipeline_mode<synchronous>, transform_indices = @transform_3, window_bounds = array<i64: 64, 32>}, {pipeline_mode = #tpu.pipeline_mode<synchronous>, transform_indices = @transform_4, window_bounds = array<i64: 1, 32>}, {pipeline_mode = #tpu.pipeline_mode<synchronous>, transform_indices = @transform_5, window_bounds = array<i64: 32, 4>}, {pipeline_mode = #tpu.pipeline_mode<synchronous>, transform_indices = @transform_6, window_bounds = array<i64: 1, 4>}, {pipeline_mode = #tpu.pipeline_mode<synchronous>, transform_indices = @transform_7, window_bounds = array<i64: 4, 128>}, {pipeline_mode = #tpu.pipeline_mode<synchronous>, transform_indices = @transform_8, window_bounds = array<i64: 132, 16>}, {transform_indices = @transform_9, window_bounds = array<i64: 8, 20>}]} {
    %c0 = arith.constant 0 : index
    %c0_0 = arith.constant 0 : index
    %0 = vector.load %arg1[%c0, %c0_0] : memref<8x64xbf16, #tpu.memory_space<vmem>>, vector<8x64xbf16>
    %c0_1 = arith.constant 0 : index
    %c0_2 = arith.constant 0 : index
    %1 = vector.load %arg2[%c0_1, %c0_2] : memref<64x128xbf16, #tpu.memory_space<vmem>>, vector<64x128xbf16>
    %cst = arith.constant dense<0.000000e+00> : vector<8x128xf32>
    %2 = tpu.matmul %0, %1, %cst {dimension_numbers = #tpu.dot_dimension_numbers<[1], [0], [0], [1], [0, 0, 1, 1], [], []>} : vector<8x64xbf16>, vector<64x128xbf16>, vector<8x128xf32> -> vector<8x128xf32>
    %c0_3 = arith.constant 0 : index
    %c0_4 = arith.constant 0 : index
    %3 = vector.load %arg3[%c0_3, %c0_4] : memref<1x128xf32, #tpu.memory_space<vmem>>, vector<1x128xf32>
    %4 = vector.broadcast %3 : vector<1x128xf32> to vector<8x128xf32>
    %5 = arith.addf %2, %4 : vector<8x128xf32>
    %cst_5 = arith.constant 0.000000e+00 : f32
    %6 = vector.broadcast %cst_5 : f32 to vector<8x128xf32>
    %7 = arith.maximumf %5, %6 : vector<8x128xf32>
    %c0_6 = arith.constant 0 : index
    %c0_7 = arith.constant 0 : index
    %8 = vector.load %arg4[%c0_6, %c0_7] : memref<64x32xbf16, #tpu.memory_space<vmem>>, vector<64x32xbf16>
    %cst_8 = arith.constant dense<0.000000e+00> : vector<8x32xf32>
    %9 = tpu.matmul %0, %8, %cst_8 {dimension_numbers = #tpu.dot_dimension_numbers<[1], [0], [0], [1], [0, 0, 1, 1], [], []>} : vector<8x64xbf16>, vector<64x32xbf16>, vector<8x32xf32> -> vector<8x32xf32>
    %c0_9 = arith.constant 0 : index
    %c0_10 = arith.constant 0 : index
    %10 = vector.load %arg5[%c0_9, %c0_10] : memref<1x32xf32, #tpu.memory_space<vmem>>, vector<1x32xf32>
    %11 = vector.broadcast %10 : vector<1x32xf32> to vector<8x32xf32>
    %12 = arith.addf %9, %11 : vector<8x32xf32>
    %cst_11 = arith.constant 0.000000e+00 : f32
    %13 = vector.broadcast %cst_11 : f32 to vector<8x32xf32>
    %14 = arith.maximumf %12, %13 : vector<8x32xf32>
    %15 = arith.truncf %14 : vector<8x32xf32> to vector<8x32xbf16>
    %c0_12 = arith.constant 0 : index
    %c0_13 = arith.constant 0 : index
    %16 = vector.load %arg6[%c0_12, %c0_13] : memref<32x4xbf16, #tpu.memory_space<vmem>>, vector<32x4xbf16>
    %cst_14 = arith.constant dense<0.000000e+00> : vector<8x4xf32>
    %17 = tpu.matmul %15, %16, %cst_14 {dimension_numbers = #tpu.dot_dimension_numbers<[1], [0], [0], [1], [0, 0, 1, 1], [], []>} : vector<8x32xbf16>, vector<32x4xbf16>, vector<8x4xf32> -> vector<8x4xf32>
    %c0_15 = arith.constant 0 : index
    %c0_16 = arith.constant 0 : index
    %18 = vector.load %arg7[%c0_15, %c0_16] : memref<1x4xf32, #tpu.memory_space<vmem>>, vector<1x4xf32>
    %19 = vector.broadcast %18 : vector<1x4xf32> to vector<8x4xf32>
    %20 = arith.addf %17, %19 : vector<8x4xf32>
    %cst_17 = arith.constant dense<0xFF800000> : vector<8xf32>
    %21 = vector.multi_reduction <maximumf>, %20, %cst_17 [1] : vector<8x4xf32> to vector<8xf32>
    %22 = vector.shape_cast %21 : vector<8xf32> to vector<8x1xf32>
    %23 = vector.broadcast %22 : vector<8x1xf32> to vector<8x4xf32>
    %24 = arith.subf %20, %23 : vector<8x4xf32>
    %25 = math.exp %24 : vector<8x4xf32>
    %cst_18 = arith.constant dense<0.000000e+00> : vector<8xf32>
    %26 = vector.multi_reduction <add>, %25, %cst_18 [1] : vector<8x4xf32> to vector<8xf32>
    %27 = vector.shape_cast %26 : vector<8xf32> to vector<8x1xf32>
    %28 = tpu.reciprocal %27 : vector<8x1xf32> -> vector<8x1xf32>
    %29 = vector.broadcast %28 : vector<8x1xf32> to vector<8x4xf32>
    %30 = arith.mulf %25, %29 : vector<8x4xf32>
    %31 = arith.truncf %30 : vector<8x4xf32> to vector<8x4xbf16>
    %c0_19 = arith.constant 0 : index
    %c0_20 = arith.constant 0 : index
    %32 = vector.load %arg8[%c0_19, %c0_20] : memref<4x128xbf16, #tpu.memory_space<vmem>>, vector<4x128xbf16>
    %cst_21 = arith.constant dense<0.000000e+00> : vector<8x128xf32>
    %33 = tpu.matmul %31, %32, %cst_21 {dimension_numbers = #tpu.dot_dimension_numbers<[1], [0], [0], [1], [0, 0, 1, 1], [], []>} : vector<8x4xbf16>, vector<4x128xbf16>, vector<8x128xf32> -> vector<8x128xf32>
    %34 = arith.mulf %7, %33 : vector<8x128xf32>
    %35 = tpu.concatenate %34, %30 in 1 : vector<8x128xf32>, vector<8x4xf32> -> vector<8x132xf32>
    %36 = arith.truncf %35 : vector<8x132xf32> to vector<8x132xbf16>
    %c0_22 = arith.constant 0 : index
    %c0_23 = arith.constant 0 : index
    %37 = vector.load %arg9[%c0_22, %c0_23] : memref<132x16xbf16, #tpu.memory_space<vmem>>, vector<132x16xbf16>
    %cst_24 = arith.constant dense<0.000000e+00> : vector<8x16xf32>
    %38 = tpu.matmul %36, %37, %cst_24 {dimension_numbers = #tpu.dot_dimension_numbers<[1], [0], [0], [1], [0, 0, 1, 1], [], []>} : vector<8x132xbf16>, vector<132x16xbf16>, vector<8x16xf32> -> vector<8x16xf32>
    %39 = tpu.concatenate %38, %30 in 1 : vector<8x16xf32>, vector<8x4xf32> -> vector<8x20xf32>
    %c0_25 = arith.constant 0 : index
    %c0_26 = arith.constant 0 : index
    %40 = vector.load %arg10[%c0_25, %c0_26] : memref<8x20xf32, #tpu.memory_space<vmem>>, vector<8x20xf32>
    tpu.vector_store %arg10[%c0_25, %c0_26], %39 {strides = array<i32>} : memref<8x20xf32, #tpu.memory_space<vmem>>, vector<8x20xf32>,
    return
  }
  func.func @transform_0(%arg0: i32) -> (i32, i32) {
    %c0_i32 = arith.constant 0 : i32
    %c0_i32_0 = arith.constant 0 : i32
    return %arg0, %c0_i32 : i32, i32
  }
  func.func @transform_1(%arg0: i32) -> (i32, i32) {
    %c0_i32 = arith.constant 0 : i32
    %c0_i32_0 = arith.constant 0 : i32
    %c0_i32_1 = arith.constant 0 : i32
    return %c0_i32, %c0_i32_0 : i32, i32
  }
  func.func @transform_2(%arg0: i32) -> (i32, i32) {
    %c0_i32 = arith.constant 0 : i32
    %c0_i32_0 = arith.constant 0 : i32
    %c0_i32_1 = arith.constant 0 : i32
    return %c0_i32, %c0_i32_0 : i32, i32
  }
  func.func @transform_3(%arg0: i32) -> (i32, i32) {
    %c0_i32 = arith.constant 0 : i32
    %c0_i32_0 = arith.constant 0 : i32
    %c0_i32_1 = arith.constant 0 : i32
    return %c0_i32, %c0_i32_0 : i32, i32
  }
  func.func @transform_4(%arg0: i32) -> (i32, i32) {
    %c0_i32 = arith.constant 0 : i32
    %c0_i32_0 = arith.constant 0 : i32
    %c0_i32_1 = arith.constant 0 : i32
    return %c0_i32, %c0_i32_0 : i32, i32
  }
  func.func @transform_5(%arg0: i32) -> (i32, i32) {
    %c0_i32 = arith.constant 0 : i32
    %c0_i32_0 = arith.constant 0 : i32
    %c0_i32_1 = arith.constant 0 : i32
    return %c0_i32, %c0_i32_0 : i32, i32
  }
  func.func @transform_6(%arg0: i32) -> (i32, i32) {
    %c0_i32 = arith.constant 0 : i32
    %c0_i32_0 = arith.constant 0 : i32
    %c0_i32_1 = arith.constant 0 : i32
    return %c0_i32, %c0_i32_0 : i32, i32
  }
  func.func @transform_7(%arg0: i32) -> (i32, i32) {
    %c0_i32 = arith.constant 0 : i32
    %c0_i32_0 = arith.constant 0 : i32
    %c0_i32_1 = arith.constant 0 : i32
    return %c0_i32, %c0_i32_0 : i32, i32
  }
  func.func @transform_8(%arg0: i32) -> (i32, i32) {
    %c0_i32 = arith.constant 0 : i32
    %c0_i32_0 = arith.constant 0 : i32
    %c0_i32_1 = arith.constant 0 : i32
    return %c0_i32, %c0_i32_0 : i32, i32
  }
  func.func @transform_9(%arg0: i32) -> (i32, i32) {
    %c0_i32 = arith.constant 0 : i32
    %c0_i32_0 = arith.constant 0 : i32
    return %arg0, %c0_i32 : i32, i32
  }
}

</mosaic_0001>

<llo_original>
// kernel: variable_selection_network.1
$region0: #{variable_selection_network.1}
  #allocation0 [shape = 'u32[]', space=smem, size = 0x4, offset = 0x4, fixed_abs, tag = 'smem constant byte address 0x4 - core index']
  #allocation1 [shape = 'u32[144,128]{1,0:T(1,128)}', space=vmem, size = 0x12000, scoped, tag = 'internal scratch']
  %s0 = inlined_call_operand.vmem [shape: bf16[8,64], index: 0, kind: input, shape index: {}]
  %s1 = inlined_call_operand.vmem [shape: bf16[64,128], index: 1, kind: input, shape index: {}]
  %s2 = inlined_call_operand.vmem [shape: f32[1,128], index: 2, kind: input, shape index: {}]
  %s3 = inlined_call_operand.vmem [shape: bf16[64,32], index: 3, kind: input, shape index: {}]
  %s4 = inlined_call_operand.vmem [shape: f32[1,32], index: 4, kind: input, shape index: {}]
  %s5 = inlined_call_operand.vmem [shape: bf16[32,4], index: 5, kind: input, shape index: {}]
  %s6 = inlined_call_operand.vmem [shape: f32[1,4], index: 6, kind: input, shape index: {}]
  %s7 = inlined_call_operand.vmem [shape: bf16[4,128], index: 7, kind: input, shape index: {}]
  %s8 = inlined_call_operand.vmem [shape: bf16[132,16], index: 8, kind: input, shape index: {}]
  %s9 = inlined_call_operand.vmem [shape: f32[8,20], index: 9, kind: output, shape index: {}]
  %s10 = sld [smem:[#allocation0]]
  $region46: #{variable_selection_network.1} parent=0
    _
  %s12 = ssub.s32 1, %s10
  %s13 = scalar_select 0, %s12, %s10
  // Predicated region
  $region2: #{variable_selection_network.1} parent=0 // pred_check
    _
  $region3: #{variable_selection_network.1} parent=0 // pred_check_branch
    %15 = sbr.rel (0) target = $region5
  $region4: #{variable_selection_network.1} parent=0 // pred_region
    _
  $region5: #{variable_selection_network.1} parent=0 // pred_fallthru
    _
  // Predicated region
  $region6: #{variable_selection_network.1} parent=0 // pred_check
    _
  $region7: #{variable_selection_network.1} parent=0 // pred_check_branch
    %17 = sbr.rel (0) target = $region9
  $region8: #{variable_selection_network.1} parent=0 // pred_region
    _
  $region9: #{variable_selection_network.1} parent=0 // pred_fallthru
    _
  // Predicated region
  $region10: #{variable_selection_network.1} parent=0 // pred_check
    _
  $region11: #{variable_selection_network.1} parent=0 // pred_check_branch
    %19 = sbr.rel (0) target = $region13
  $region12: #{variable_selection_network.1} parent=0 // pred_region
    _
  $region13: #{variable_selection_network.1} parent=0 // pred_fallthru
    _
  // Predicated region
  $region14: #{variable_selection_network.1} parent=0 // pred_check
    _
  $region15: #{variable_selection_network.1} parent=0 // pred_check_branch
    %21 = sbr.rel (0) target = $region17
  $region16: #{variable_selection_network.1} parent=0 // pred_region
    _
  $region17: #{variable_selection_network.1} parent=0 // pred_fallthru
    _
  // Predicated region
  $region18: #{variable_selection_network.1} parent=0 // pred_check
    _
  $region19: #{variable_selection_network.1} parent=0 // pred_check_branch
    %23 = sbr.rel (0) target = $region21
  $region20: #{variable_selection_network.1} parent=0 // pred_region
    _
  $region21: #{variable_selection_network.1} parent=0 // pred_fallthru
    _
  // Predicated region
  $region22: #{variable_selection_network.1} parent=0 // pred_check
    _
  $region23: #{variable_selection_network.1} parent=0 // pred_check_branch
    %25 = sbr.rel (0) target = $region25
  $region24: #{variable_selection_network.1} parent=0 // pred_region
    _
  $region25: #{variable_selection_network.1} parent=0 // pred_fallthru
    _
  // Predicated region
  $region26: #{variable_selection_network.1} parent=0 // pred_check
    _
  $region27: #{variable_selection_network.1} parent=0 // pred_check_branch
    %27 = sbr.rel (0) target = $region29
  $region28: #{variable_selection_network.1} parent=0 // pred_region
    _
  $region29: #{variable_selection_network.1} parent=0 // pred_fallthru
    _
  // Predicated region
  $region30: #{variable_selection_network.1} parent=0 // pred_check
    _
  $region31: #{variable_selection_network.1} parent=0 // pred_check_branch
    %29 = sbr.rel (0) target = $region33
  $region32: #{variable_selection_network.1} parent=0 // pred_region
    _
  $region33: #{variable_selection_network.1} parent=0 // pred_fallthru
    _
  // Predicated region
  $region34: #{variable_selection_network.1} parent=0 // pred_check
    _
  $region35: #{variable_selection_network.1} parent=0 // pred_check_branch
    %31 = sbr.rel (0) target = $region37
  $region36: #{variable_selection_network.1} parent=0 // pred_region
    _
  $region37: #{variable_selection_network.1} parent=0 // pred_fallthru
    _
  %v33 = vld [vmem:[%s0] sm:$0xf]
  %v34 = vld [vmem:[%s1] sm:$0xf]
  %v35 = vld [vmem:[%s1 + $0x4] sm:$0xf]
  %v36 = vld [vmem:[%s1 + $0x8] sm:$0xf]
  %v37 = vld [vmem:[%s1 + $0xc] sm:$0xf]
  %v38 = vld [vmem:[%s1 + $0x10] sm:$0xf]
  %v39 = vld [vmem:[%s1 + $0x14] sm:$0xf]
  %v40 = vld [vmem:[%s1 + $0x18] sm:$0xf]
  %v41 = vld [vmem:[%s1 + $0x1c] sm:$0xf]
  %v42 = vld [vmem:[%s2] sm:$0x1]
  %v44 = vlaneseq
  %v45 = vshrl.u32 %v44, 7
  %v46 = vsub.s32 0, %v45
  %v47 = vrot.slane %v42, %v46
  %v57 = vunpack.c.l.b16 %v34
  %v58 = vunpack.c.l.b16 %v35
  %v59 = vunpack.c.l.b16 %v36
  %v60 = vunpack.c.l.b16 %v37
  %v61 = vunpack.c.l.b16 %v38
  %v62 = vunpack.c.l.b16 %v39
  %v63 = vunpack.c.l.b16 %v40
  %v64 = vunpack.c.l.b16 %v41
  %v65 = vpack.c.b16 %v58, %v57
  %v66 = vpack.c.b16 %v60, %v59
  %v67 = vpack.c.b16 %v62, %v61
  %v68 = vpack.c.b16 %v64, %v63
  %vm73 = vcmask 523264
  %v75 = vsel %vm73, %v33, 0
  %77 = vmatprep.subr.bf16.mxu0 0
  %78 = vmatpush1.bf16.msra.mxu0 %v65
  %79 = vmatprep.subr.bf16.mxu0 0
  %80 = vmatpush1.bf16.msra.mxu0 %v66
  %81 = vmatprep.subr.bf16.mxu0 0
  %82 = vmatpush1.bf16.msra.mxu0 %v67
  %83 = vmatprep.subr.bf16.mxu0 0
  %84 = vmatpush1.bf16.msra.mxu0 %v68
  %85 = vmatprep.subr.bf16.mxu0 0
  %86 = vmatpush1.bf16.msra.mxu0 0
  %87 = vmatprep.subr.bf16.mxu0 0
  %88 = vmatpush1.bf16.msra.mxu0 0
  %89 = vmatprep.subr.bf16.mxu0 0
  %90 = vmatpush1.bf16.msra.mxu0 0
  %91 = vmatprep.subr.bf16.mxu0 0
  %92 = vmatpush1.bf16.msra.mxu0 0
  %93 = vmatprep.subr.bf16.mxu0 0
  %94 = vmatpush1.bf16.msra.mxu0 0
  %95 = vmatprep.subr.bf16.mxu0 0
  %96 = vmatpush1.bf16.msra.mxu0 0
  %97 = vmatprep.subr.bf16.mxu0 0
  %98 = vmatpush1.bf16.msra.mxu0 0
  %99 = vmatprep.subr.bf16.mxu0 0
  %100 = vmatpush1.bf16.msra.mxu0 0
  %101 = vmatprep.subr.bf16.mxu0 0
  %102 = vmatpush1.bf16.msra.mxu0 0
  %103 = vmatprep.subr.bf16.mxu0 0
  %104 = vmatpush1.bf16.msra.mxu0 0
  %105 = vmatprep.subr.bf16.mxu0 0
  %106 = vmatpush1.bf16.msra.mxu0 0
  %107 = vmatprep.subr.bf16.mxu0 0
  %108 = vmatpush1.bf16.msra.mxu0 0
  %109 = vmatprep.mubr.bf16.mxu0 0
  %110 = vmatmul.mubr.bf16.gmra.mrb[0].mxu0 %v75
  %v111 = vpop.f32.mrb[0].mxu0
  %v112 = vadd.f32 %v47, %v111
  %v113 = vpop.f32.mrb[0].mxu0
  %v114 = vpop.f32.mrb[0].mxu0
  %v115 = vpop.f32.mrb[0].mxu0
  %116 = vdwg.mxu0
  %v117 = vmax.f32 %v112, 0.0
  %v118 = vld [vmem:[%s3] sm:$0xf]
  %v119 = vld [vmem:[%s3 + $0x4] sm:$0xf]
  %v120 = vld [vmem:[%s3 + $0x8] sm:$0xf]
  %v121 = vld [vmem:[%s3 + $0xc] sm:$0xf]
  %v122 = vld [vmem:[%s3 + $0x10] sm:$0xf]
  %v123 = vld [vmem:[%s3 + $0x14] sm:$0xf]
  %v124 = vld [vmem:[%s3 + $0x18] sm:$0xf]
  %v125 = vld [vmem:[%s3 + $0x1c] sm:$0xf]
  %v126 = vld [vmem:[%s4] sm:$0x1]
  %v128 = vlaneseq
  %v129 = vshrl.u32 %v128, 7
  %v130 = vsub.s32 0, %v129
  %v131 = vrot.slane %v126, %v130
  %v141 = vunpack.c.l.b16 %v118
  %v142 = vunpack.c.l.b16 %v119
  %v143 = vunpack.c.l.b16 %v120
  %v144 = vunpack.c.l.b16 %v121
  %v145 = vunpack.c.l.b16 %v122
  %v146 = vunpack.c.l.b16 %v123
  %v147 = vunpack.c.l.b16 %v124
  %v148 = vunpack.c.l.b16 %v125
  %v149 = vpack.c.b16 %v142, %v141
  %v150 = vpack.c.b16 %v144, %v143
  %v151 = vpack.c.b16 %v146, %v145
  %v152 = vpack.c.b16 %v148, %v147
  %157 = vmatprep.subr.bf16.mxu0 0
  %158 = vmatpush1.bf16.msra.mxu0 %v149
  %159 = vmatprep.subr.bf16.mxu0 0
  %160 = vmatpush1.bf16.msra.mxu0 %v150
  %161 = vmatprep.subr.bf16.mxu0 0
  %162 = vmatpush1.bf16.msra.mxu0 %v151
  %163 = vmatprep.subr.bf16.mxu0 0
  %164 = vmatpush1.bf16.msra.mxu0 %v152
  %165 = vmatprep.subr.bf16.mxu0 0
  %166 = vmatpush1.bf16.msra.mxu0 0
  %167 = vmatprep.subr.bf16.mxu0 0
  %168 = vmatpush1.bf16.msra.mxu0 0
  %169 = vmatprep.subr.bf16.mxu0 0
  %170 = vmatpush1.bf16.msra.mxu0 0
  %171 = vmatprep.subr.bf16.mxu0 0
  %172 = vmatpush1.bf16.msra.mxu0 0
  %173 = vmatprep.subr.bf16.mxu0 0
  %174 = vmatpush1.bf16.msra.mxu0 0
  %175 = vmatprep.subr.bf16.mxu0 0
  %176 = vmatpush1.bf16.msra.mxu0 0
  %177 = vmatprep.subr.bf16.mxu0 0
  %178 = vmatpush1.bf16.msra.mxu0 0
  %179 = vmatprep.subr.bf16.mxu0 0
  %180 = vmatpush1.bf16.msra.mxu0 0
  %181 = vmatprep.subr.bf16.mxu0 0
  %182 = vmatpush1.bf16.msra.mxu0 0
  %183 = vmatprep.subr.bf16.mxu0 0
  %184 = vmatpush1.bf16.msra.mxu0 0
  %185 = vmatprep.subr.bf16.mxu0 0
  %186 = vmatpush1.bf16.msra.mxu0 0
  %187 = vmatprep.subr.bf16.mxu0 0
  %188 = vmatpush1.bf16.msra.mxu0 0
  %189 = vmatprep.mubr.bf16.mxu0 0
  %190 = vmatmul.mubr.bf16.gmra.mrb[0].mxu0 %v75
  %v191 = vpop.f32.mrb[0].mxu0
  %v192 = vadd.f32 %v131, %v191
  %v193 = vpop.f32.mrb[0].mxu0
  %v194 = vpop.f32.mrb[0].mxu0
  %v195 = vpop.f32.mrb[0].mxu0
  %196 = vdwg.mxu0
  %v197 = vmax.f32 %v192, 0.0
  %v198 = vpack.c.bf16 %v197, %v197
  %v199 = vld [vmem:[%s5] sm:$0xf]
  %v200 = vld [vmem:[%s5 + $0x4] sm:$0xf]
  %v201 = vld [vmem:[%s5 + $0x8] sm:$0xf]
  %v202 = vld [vmem:[%s5 + $0xc] sm:$0xf]
  %v203 = vld [vmem:[%s6] sm:$0x1]
  %v205 = vlaneseq
  %v206 = vshrl.u32 %v205, 7
  %v207 = vsub.s32 0, %v206
  %v208 = vrot.slane %v203, %v207
  %v214 = vunpack.c.l.b16 %v199
  %v215 = vunpack.c.l.b16 %v200
  %v216 = vunpack.c.l.b16 %v201
  %v217 = vunpack.c.l.b16 %v202
  %v218 = vpack.c.b16 %v215, %v214
  %v219 = vpack.c.b16 %v217, %v216
  %vm222 = vcmask 261120
  %v224 = vsel %vm222, %v198, 0
  %226 = vmatprep.subr.bf16.mxu0 0
  %227 = vmatpush1.bf16.msra.mxu0 %v218
  %228 = vmatprep.subr.bf16.mxu0 0
  %229 = vmatpush1.bf16.msra.mxu0 %v219
  %230 = vmatprep.subr.bf16.mxu0 0
  %231 = vmatpush1.bf16.msra.mxu0 0
  %232 = vmatprep.subr.bf16.mxu0 0
  %233 = vmatpush1.bf16.msra.mxu0 0
  %234 = vmatprep.subr.bf16.mxu0 0
  %235 = vmatpush1.bf16.msra.mxu0 0
  %236 = vmatprep.subr.bf16.mxu0 0
  %237 = vmatpush1.bf16.msra.mxu0 0
  %238 = vmatprep.subr.bf16.mxu0 0
  %239 = vmatpush1.bf16.msra.mxu0 0
  %240 = vmatprep.subr.bf16.mxu0 0
  %241 = vmatpush1.bf16.msra.mxu0 0
  %242 = vmatprep.subr.bf16.mxu0 0
  %243 = vmatpush1.bf16.msra.mxu0 0
  %244 = vmatprep.subr.bf16.mxu0 0
  %245 = vmatpush1.bf16.msra.mxu0 0
  %246 = vmatprep.subr.bf16.mxu0 0
  %247 = vmatpush1.bf16.msra.mxu0 0
  %248 = vmatprep.subr.bf16.mxu0 0
  %249 = vmatpush1.bf16.msra.mxu0 0
  %250 = vmatprep.subr.bf16.mxu0 0
  %251 = vmatpush1.bf16.msra.mxu0 0
  %252 = vmatprep.subr.bf16.mxu0 0
  %253 = vmatpush1.bf16.msra.mxu0 0
  %254 = vmatprep.subr.bf16.mxu0 0
  %255 = vmatpush1.bf16.msra.mxu0 0
  %256 = vmatprep.subr.bf16.mxu0 0
  %257 = vmatpush1.bf16.msra.mxu0 0
  %258 = vmatprep.mubr.bf16.mxu0 0
  %259 = vmatmul.mubr.bf16.gmra.mrb[0].mxu0 %v224
  %v260 = vpop.f32.mrb[0].mxu0
  %v261 = vadd.f32 %v208, %v260
  %v262 = vpop.f32.mrb[0].mxu0
  %v263 = vpop.f32.mrb[0].mxu0
  %v264 = vpop.f32.mrb[0].mxu0
  %265 = vdwg.mxu0
  %vm266 = vcmask 31744
  %v267 = vsel %vm266, %v261, -inf
  %268 = vmax.xlane.f32.xlu0 %v267
  %v269 = vpop.xlane.xlu0 %268
  %v270 = vsub.f32 %v261, %v269
  %v271 = vmul.f32 %v270, 1.442695
  %v272 = vpow.pop %v271
  %v273 = vsel %vm266, %v272, 0.0
  %274 = vadd.xlane.f32.xlu0 %v273
  %v275 = vpop.xlane.xlu0 %274
  %v276 = vrcp.pop %v275
  %v277 = vmul.f32 %v272, %v276
  %v278 = vpack.c.bf16 %v277, %v277
  %v279 = vld [vmem:[%s7] sm:$0x3]
  %v281 = vsel %vm266, %v278, 0
  %vm283 = vcmask 1041408
  %v285 = vsel %vm283, %v279, 0
  %287 = vmatprep.subr.bf16.mxu0 0
  %288 = vmatpush1.bf16.msra.mxu0 %v285
  %289 = vmatprep.subr.bf16.mxu0 0
  %290 = vmatpush1.bf16.msra.mxu0 0
  %291 = vmatprep.subr.bf16.mxu0 0
  %292 = vmatpush1.bf16.msra.mxu0 0
  %293 = vmatprep.subr.bf16.mxu0 0
  %294 = vmatpush1.bf16.msra.mxu0 0
  %295 = vmatprep.subr.bf16.mxu0 0
  %296 = vmatpush1.bf16.msra.mxu0 0
  %297 = vmatprep.subr.bf16.mxu0 0
  %298 = vmatpush1.bf16.msra.mxu0 0
  %299 = vmatprep.subr.bf16.mxu0 0
  %300 = vmatpush1.bf16.msra.mxu0 0
  %301 = vmatprep.subr.bf16.mxu0 0
  %302 = vmatpush1.bf16.msra.mxu0 0
  %303 = vmatprep.subr.bf16.mxu0 0
  %304 = vmatpush1.bf16.msra.mxu0 0
  %305 = vmatprep.subr.bf16.mxu0 0
  %306 = vmatpush1.bf16.msra.mxu0 0
  %307 = vmatprep.subr.bf16.mxu0 0
  %308 = vmatpush1.bf16.msra.mxu0 0
  %309 = vmatprep.subr.bf16.mxu0 0
  %310 = vmatpush1.bf16.msra.mxu0 0
  %311 = vmatprep.subr.bf16.mxu0 0
  %312 = vmatpush1.bf16.msra.mxu0 0
  %313 = vmatprep.subr.bf16.mxu0 0
  %314 = vmatpush1.bf16.msra.mxu0 0
  %315 = vmatprep.subr.bf16.mxu0 0
  %316 = vmatpush1.bf16.msra.mxu0 0
  %317 = vmatprep.subr.bf16.mxu0 0
  %318 = vmatpush1.bf16.msra.mxu0 0
  %319 = vmatprep.mubr.bf16.mxu0 0
  %320 = vmatmul.mubr.bf16.gmra.mrb[0].mxu0 %v281
  %v321 = vpop.f32.mrb[0].mxu0
  %v322 = vadd.f32 0.0, %v321
  %v323 = vpop.f32.mrb[0].mxu0
  %v324 = vpop.f32.mrb[0].mxu0
  %v325 = vpop.f32.mrb[0].mxu0
  %326 = vdwg.mxu0
  %v327 = vmul.f32 %v117, %v322
  %v328 = vpack.c.bf16 %v327, %v327
  %v329 = vld [vmem:[%s8] sm:$0xf]
  %v330 = vld [vmem:[%s8 + $0x4] sm:$0xf]
  %v331 = vld [vmem:[%s8 + $0x8] sm:$0xf]
  %v332 = vld [vmem:[%s8 + $0xc] sm:$0xf]
  %v333 = vld [vmem:[%s8 + $0x10] sm:$0xf]
  %v334 = vld [vmem:[%s8 + $0x14] sm:$0xf]
  %v335 = vld [vmem:[%s8 + $0x18] sm:$0xf]
  %v336 = vld [vmem:[%s8 + $0x1c] sm:$0xf]
  %v337 = vld [vmem:[%s8 + $0x20] sm:$0xf]
  %v338 = vld [vmem:[%s8 + $0x24] sm:$0xf]
  %v339 = vld [vmem:[%s8 + $0x28] sm:$0xf]
  %v340 = vld [vmem:[%s8 + $0x2c] sm:$0xf]
  %v341 = vld [vmem:[%s8 + $0x30] sm:$0xf]
  %v342 = vld [vmem:[%s8 + $0x34] sm:$0xf]
  %v343 = vld [vmem:[%s8 + $0x38] sm:$0xf]
  %v344 = vld [vmem:[%s8 + $0x3c] sm:$0xf]
  %v345 = vld [vmem:[%s8 + $0x40] sm:$0x3]
  %v363 = vunpack.c.l.b16 %v329
  %v364 = vunpack.c.l.b16 %v330
  %v365 = vunpack.c.l.b16 %v331
  %v366 = vunpack.c.l.b16 %v332
  %v367 = vunpack.c.l.b16 %v333
  %v368 = vunpack.c.l.b16 %v334
  %v369 = vunpack.c.l.b16 %v335
  %v370 = vunpack.c.l.b16 %v336
  %v371 = vunpack.c.l.b16 %v337
  %v372 = vunpack.c.l.b16 %v338
  %v373 = vunpack.c.l.b16 %v339
  %v374 = vunpack.c.l.b16 %v340
  %v375 = vunpack.c.l.b16 %v341
  %v376 = vunpack.c.l.b16 %v342
  %v377 = vunpack.c.l.b16 %v343
  %v378 = vunpack.c.l.b16 %v344
  %v379 = vunpack.c.l.b16 %v345
  %v380 = vpack.c.b16 %v364, %v363
  %v381 = vpack.c.b16 %v366, %v365
  %v382 = vpack.c.b16 %v368, %v367
  %v383 = vpack.c.b16 %v370, %v369
  %v384 = vpack.c.b16 %v372, %v371
  %v385 = vpack.c.b16 %v374, %v373
  %v386 = vpack.c.b16 %v376, %v375
  %v387 = vpack.c.b16 %v378, %v377
  %v388 = vpack.c.b16 %v379, %v379
  %v398 = vsel %vm283, %v388, 0
  %400 = vmatprep.subr.bf16.mxu0 0
  %401 = vmatpush1.bf16.msra.mxu0 %v380
  %402 = vmatprep.subr.bf16.mxu0 0
  %403 = vmatpush1.bf16.msra.mxu0 %v381
  %404 = vmatprep.subr.bf16.mxu0 0
  %405 = vmatpush1.bf16.msra.mxu0 %v382
  %406 = vmatprep.subr.bf16.mxu0 0
  %407 = vmatpush1.bf16.msra.mxu0 %v383
  %408 = vmatprep.subr.bf16.mxu0 0
  %409 = vmatpush1.bf16.msra.mxu0 %v384
  %410 = vmatprep.subr.bf16.mxu0 0
  %411 = vmatpush1.bf16.msra.mxu0 %v385
  %412 = vmatprep.subr.bf16.mxu0 0
  %413 = vmatpush1.bf16.msra.mxu0 %v386
  %414 = vmatprep.subr.bf16.mxu0 0
  %415 = vmatpush1.bf16.msra.mxu0 %v387
  %416 = vmatprep.subr.bf16.mxu0 0
  %417 = vmatpush1.bf16.msra.mxu0 %v398
  %418 = vmatprep.subr.bf16.mxu0 0
  %419 = vmatpush1.bf16.msra.mxu0 0
  %420 = vmatprep.subr.bf16.mxu0 0
  %421 = vmatpush1.bf16.msra.mxu0 0
  %422 = vmatprep.subr.bf16.mxu0 0
  %423 = vmatpush1.bf16.msra.mxu0 0
  %424 = vmatprep.subr.bf16.mxu0 0
  %425 = vmatpush1.bf16.msra.mxu0 0
  %426 = vmatprep.subr.bf16.mxu0 0
  %427 = vmatpush1.bf16.msra.mxu0 0
  %428 = vmatprep.subr.bf16.mxu0 0
  %429 = vmatpush1.bf16.msra.mxu0 0
  %430 = vmatprep.subr.bf16.mxu0 0
  %431 = vmatpush1.bf16.msra.mxu0 0
  %432 = vmatprep.mubr.bf16.mxu0 %v281
  %433 = vmatmul.mubr.bf16.gmra.mrb[0].mxu0 %v328
  %v434 = vpop.f32.mrb[0].mxu0
  %v435 = vadd.f32 0.0, %v434
  %v436 = vpop.f32.mrb[0].mxu0
  %v437 = vpop.f32.mrb[0].mxu0
  %v438 = vpop.f32.mrb[0].mxu0
  %439 = vdwg.mxu0
  %441 = vrot.lane.b32.xlu0 %v277, 16
  %v442 = vpop.permute.xlu0 %441
  %vm444 = vcmask 130048
  %v445 = vsel %vm444, %v435, %v442
  %vm446 = vcmask 162816
  %447 = vst.msk [vmem:[%s9] sm:$0xff] %vm446, %v445
  // Predicated region
  $region38: #{variable_selection_network.1} parent=0 // pred_check
    _
  $region39: #{variable_selection_network.1} parent=0 // pred_check_branch
    %449 = sbr.rel (0) target = $region41
  $region40: #{variable_selection_network.1} parent=0 // pred_region
    _
  $region41: #{variable_selection_network.1} parent=0 // pred_fallthru
    _
  // Predicated region
  $region42: #{variable_selection_network.1} parent=0 // pred_check
    _
  $region43: #{variable_selection_network.1} parent=0 // pred_check_branch
    %451 = sbr.rel (0) target = $region45
  $region44: #{variable_selection_network.1} parent=0 // pred_region
    _
  $region45: #{variable_selection_network.1} parent=0 // pred_fallthru
    _

</llo_original>
